<compile_context>
chip_gen: v5e
topology: v5e:2x2
jax: 0.10.0
libtpu: 0.0.40
codegen_flags: <defaults>
</compile_context>

<pallas_src>
import jax
import jax.numpy as jnp
from jax.experimental import pallas as pl
from jax.experimental.pallas import tpu as pltpu


def _simple_attention_kernel(x_ref, wl_ref, wc_ref, o_ref):
    # x_ref : (Bb, C, T)     tile of spatial locations (lane axis = spatial)
    # wl_ref: (C, C)         nn.Linear weight, (out, in) layout (resident)
    # wc_ref: (OUT_C, C)     1x1 conv weight squeezed to (out, in) (resident)
    # o_ref : (Bb, OUT_C, T)
    wl = wl_ref[...]
    wc = wc_ref[...]
    for b in range(x_ref.shape[0]):           # Bb is small & static -> unrolled
        x = x_ref[b]                          # (C, T), native dtype
        # gated linear: (Wl @ x) * x, f32 accumulation on the MXU
        y = jnp.dot(wl, x, preferred_element_type=jnp.float32) * x
        y = y.astype(x.dtype)
        # 1x1 conv == Wc @ y
        out = jnp.dot(wc, y, preferred_element_type=jnp.float32)
        o_ref[b] = out.astype(o_ref.dtype)


def _round_down_128(n):
    return (n // 128) * 128


def _vmem_capacity_bytes():
    try:
        cap = getattr(pltpu.get_tpu_info(), "vmem_capacity_bytes", None)
        if cap:
            return int(cap)
    except Exception:
        pass
    return 64 * 1024 * 1024  # conservative fallback: v7x per-TensorCore VMEM


def simple_attention(x_nchw, w_linear, w_conv, *, tile_hw=None, batch_block=None):
    """x_nchw: (B, C, H, W); w_linear: (C, C); w_conv: (OUT_C, C) -> (B, OUT_C, H, W)."""
    B, C, H, W = x_nchw.shape
    OUT_C = w_conv.shape[0]
    HW = H * W
    itemsize = jnp.dtype(x_nchw.dtype).itemsize

    # NCHW -> (B, C, H*W): contiguous reshape, no transpose / HBM round trip.
    x3 = x_nchw.reshape(B, C, HW)

    # ---- per-generation VMEM budget (25% headroom for compiler scratch) ----
    budget = int(_vmem_capacity_bytes() * 0.75)
    w_bytes = (C * C + OUT_C * C) * itemsize            # resident weights
    lane_bytes = 2 * (C + OUT_C) * itemsize             # dbl-buffered x+out per (batch,lane)
    avail = max(budget - 2 * w_bytes, lane_bytes * 128)

    # ---- tile / batch-block selection (dtype-aware, fills the VMEM budget) --
    max_lanes = avail // lane_bytes
    if max_lanes >= HW or HW <= 128:
        tile = HW
        bb = max(1, min(B, int(avail // max(lane_bytes * HW, 1))))
    else:
        tile = max(128, _round_down_128(int(max_lanes)))
        bb = 1

    if tile_hw is not None:                              # manual override
        tile = min(int(tile_hw), HW)
        if tile < HW:
            tile = max(128, _round_down_128(tile))
        if tile >= HW or HW <= 128:
            tile = HW
    if batch_block is not None:
        bb = max(1, min(int(batch_block), B))

    # ---- guarantee >= 2 grid steps along a parallel axis (v7x megacore) ----
    if pl.cdiv(B, bb) * pl.cdiv(HW, tile) < 2:
        if B >= 2 and bb > 1:
            bb = pl.cdiv(B, 2)                           # split the batch axis
        elif tile == HW and HW >= 256:
            tile = _round_down_128(HW // 2)              # split the lane axis

    grid = (pl.cdiv(B, bb), pl.cdiv(HW, tile))

    # ---- scoped-VMEM request: actual need + margin, no artificial floor ----
    need = (2 * bb * (C + OUT_C) * tile + 2 * (C * C + OUT_C * C)) * itemsize
    vmem_limit = int(min(max(int(need * 1.5), 4 * 1024 * 1024), budget))

    out3 = pl.pallas_call(
        _simple_attention_kernel,
        out_shape=jax.ShapeDtypeStruct((B, OUT_C, HW), x_nchw.dtype),
        grid_spec=pltpu.PrefetchScalarGridSpec(
            num_scalar_prefetch=0,
            grid=grid,
            in_specs=[
                pl.BlockSpec((bb, C, tile), lambda i, j: (i, 0, j)),   # x tile
                pl.BlockSpec((C, C), lambda i, j: (0, 0)),             # Wl, resident
                pl.BlockSpec((OUT_C, C), lambda i, j: (0, 0)),         # Wc, resident
            ],
            out_specs=pl.BlockSpec((bb, OUT_C, tile), lambda i, j: (i, 0, j)),
        ),
        compiler_params=pltpu.CompilerParams(
            dimension_semantics=("parallel", "parallel"),
            vmem_limit_bytes=vmem_limit),
    )(x3, w_linear, w_conv)

    # (B, OUT_C, H*W) -> (B, OUT_C, H, W): again a pure reshape.
    return out3.reshape(B, OUT_C, H, W)


def _reference(x_nchw, w_linear, w_conv):
    # Pure-JAX replica of the PyTorch forward for validation.
    xt = jnp.transpose(x_nchw, (0, 3, 2, 1))              # transpose(1, -1)
    y = jnp.einsum("bwhc,oc->bwho", xt, w_linear) * xt    # linear(x) * x
    y = jnp.transpose(y, (0, 3, 2, 1))                    # (B, C, H, W)
    out = jnp.einsum("bchw,oc->bohw", y, w_conv)          # 1x1 conv, no bias
    return out


if __name__ == "__main__":
    key = jax.random.PRNGKey(0)
    keys = jax.random.split(key, 12)

    # Case 1: module-scale shapes from the spec (auto tile / batch-block;
    # exercises the "split batch to keep >=2 parallel steps" path).
    B, C, H, W, OUT_C = 2, 4, 16, 16, 8
    x = jax.random.normal(keys[0], (B, C, H, W), dtype=jnp.float32)
    wl = jax.random.normal(keys[1], (C, C), dtype=jnp.float32) * 0.1
    wc = jax.random.normal(keys[2], (OUT_C, C), dtype=jnp.float32) * 0.1
    out = jax.block_until_ready(simple_attention(x, wl, wc))
    ref = jax.block_until_ready(_reference(x, wl, wc))
    assert out.shape == (B, OUT_C, H, W), out.shape
    assert jnp.allclose(out, ref, atol=1e-4, rtol=1e-4), float(
        jnp.max(jnp.abs(out - ref)))

    # Case 2: multi-tile grid with a ragged last block (no-padding path).
    B2, C2, H2, W2, OUT_C2 = 1, 8, 12, 20, 16             # HW = 240, tile = 128
    x2 = jax.random.normal(keys[3], (B2, C2, H2, W2), dtype=jnp.float32)
    wl2 = jax.random.normal(keys[4], (C2, C2), dtype=jnp.float32) * 0.1
    wc2 = jax.random.normal(keys[5], (OUT_C2, C2), dtype=jnp.float32) * 0.1
    out2 = jax.block_until_ready(
        simple_attention(x2, wl2, wc2, tile_hw=128, batch_block=1))
    ref2 = jax.block_until_ready(_reference(x2, wl2, wc2))
    assert out2.shape == (B2, OUT_C2, H2, W2), out2.shape
    assert jnp.allclose(out2, ref2, atol=1e-4, rtol=1e-4), float(
        jnp.max(jnp.abs(out2 - ref2)))

    # Case 3: B=1, whole map fits -> auto lane split so both v7x TCs get work.
    B3, C3, H3, W3, OUT_C3 = 1, 8, 16, 32, 16              # HW = 512 -> 2 x 256
    x3 = jax.random.normal(keys[6], (B3, C3, H3, W3), dtype=jnp.float32)
    wl3 = jax.random.normal(keys[7], (C3, C3), dtype=jnp.float32) * 0.1
    wc3 = jax.random.normal(keys[8], (OUT_C3, C3), dtype=jnp.float32) * 0.1
    out3 = jax.block_until_ready(simple_attention(x3, wl3, wc3))
    ref3 = jax.block_until_ready(_reference(x3, wl3, wc3))
    assert out3.shape == (B3, OUT_C3, H3, W3), out3.shape
    assert jnp.allclose(out3, ref3, atol=1e-4, rtol=1e-4), float(
        jnp.max(jnp.abs(out3 - ref3)))

    # Case 4: tiny feature map, multiple batches folded per step (Bb > 1).
    B4, C4, H4, W4, OUT_C4 = 4, 4, 8, 8, 8                 # HW = 64 < 128
    x4 = jax.random.normal(keys[9], (B4, C4, H4, W4), dtype=jnp.float32)
    wl4 = jax.random.normal(keys[10], (C4, C4), dtype=jnp.float32) * 0.1
    wc4 = jax.random.normal(keys[11], (OUT_C4, C4), dtype=jnp.float32) * 0.1
    out4 = jax.block_until_ready(simple_attention(x4, wl4, wc4))
    ref4 = jax.block_until_ready(_reference(x4, wl4, wc4))
    assert out4.shape == (B4, OUT_C4, H4, W4), out4.shape
    assert jnp.allclose(out4, ref4, atol=1e-4, rtol=1e-4), float(
        jnp.max(jnp.abs(out4 - ref4)))

    print("KERNEL_OK")
</pallas_src>

<mosaic_0001>
module attributes {stable_mosaic.version = 11 : i64} {
  func.func @_simple_attention_kernel(%arg0: i32, %arg1: i32, %arg2: memref<1x4x256xf32, #tpu.memory_space<vmem>>, %arg3: memref<4x4xf32, #tpu.memory_space<vmem>>, %arg4: memref<8x4xf32, #tpu.memory_space<vmem>>, %arg5: memref<1x8x256xf32, #tpu.memory_space<vmem>>) attributes {dimension_semantics = [#tpu.dimension_semantics<parallel>, #tpu.dimension_semantics<parallel>], iteration_bounds = array<i64: 2, 1>, scalar_prefetch = 0 : i64, scratch_operands = 0 : i64, tpu.core_type = #tpu.core_type<tc>, window_params = [{transform_indices = @transform_0, window_bounds = array<i64: 1, 4, 256>}, {pipeline_mode = #tpu.pipeline_mode<synchronous>, transform_indices = @transform_1, window_bounds = array<i64: 4, 4>}, {pipeline_mode = #tpu.pipeline_mode<synchronous>, transform_indices = @transform_2, window_bounds = array<i64: 8, 4>}, {transform_indices = @transform_3, window_bounds = array<i64: 1, 8, 256>}]} {
    %c0 = arith.constant 0 : index
    %c0_0 = arith.constant 0 : index
    %0 = vector.load %arg3[%c0, %c0_0] : memref<4x4xf32, #tpu.memory_space<vmem>>, vector<4x4xf32>
    %c0_1 = arith.constant 0 : index
    %c0_2 = arith.constant 0 : index
    %1 = vector.load %arg4[%c0_1, %c0_2] : memref<8x4xf32, #tpu.memory_space<vmem>>, vector<8x4xf32>
    %c0_3 = arith.constant 0 : index
    %c0_4 = arith.constant 0 : index
    %c0_5 = arith.constant 0 : index
    %2 = vector.load %arg2[%c0_3, %c0_4, %c0_5] : memref<1x4x256xf32, #tpu.memory_space<vmem>>, vector<1x4x256xf32>
    %3 = vector.shape_cast %2 : vector<1x4x256xf32> to vector<4x256xf32>
    %cst = arith.constant dense<0.000000e+00> : vector<4x256xf32>
    %4 = tpu.matmul %0, %3, %cst {dimension_numbers = #tpu.dot_dimension_numbers<[1], [0], [0], [1], [0, 0, 1, 1], [], []>} : vector<4x4xf32>, vector<4x256xf32>, vector<4x256xf32> -> vector<4x256xf32>
    %5 = arith.mulf %4, %3 : vector<4x256xf32>
    %cst_6 = arith.constant dense<0.000000e+00> : vector<8x256xf32>
    %6 = tpu.matmul %1, %5, %cst_6 {dimension_numbers = #tpu.dot_dimension_numbers<[1], [0], [0], [1], [0, 0, 1, 1], [], []>} : vector<8x4xf32>, vector<4x256xf32>, vector<8x256xf32> -> vector<8x256xf32>
    %c0_7 = arith.constant 0 : index
    %c0_8 = arith.constant 0 : index
    %c0_9 = arith.constant 0 : index
    %7 = vector.load %arg5[%c0_7, %c0_8, %c0_9] : memref<1x8x256xf32, #tpu.memory_space<vmem>>, vector<1x8x256xf32>
    %8 = vector.shape_cast %7 : vector<1x8x256xf32> to vector<8x256xf32>
    %9 = vector.shape_cast %6 : vector<8x256xf32> to vector<1x8x256xf32>
    tpu.vector_store %arg5[%c0_7, %c0_8, %c0_9], %9 {strides = array<i32>} : memref<1x8x256xf32, #tpu.memory_space<vmem>>, vector<1x8x256xf32>,
    return
  }
  func.func @transform_0(%arg0: i32, %arg1: i32) -> (i32, i32, i32) {
    %c0_i32 = arith.constant 0 : i32
    %c0_i32_0 = arith.constant 0 : i32
    return %arg0, %c0_i32, %arg1 : i32, i32, i32
  }
  func.func @transform_1(%arg0: i32, %arg1: i32) -> (i32, i32) {
    %c0_i32 = arith.constant 0 : i32
    %c0_i32_0 = arith.constant 0 : i32
    %c0_i32_1 = arith.constant 0 : i32
    return %c0_i32, %c0_i32_0 : i32, i32
  }
  func.func @transform_2(%arg0: i32, %arg1: i32) -> (i32, i32) {
    %c0_i32 = arith.constant 0 : i32
    %c0_i32_0 = arith.constant 0 : i32
    %c0_i32_1 = arith.constant 0 : i32
    return %c0_i32, %c0_i32_0 : i32, i32
  }
  func.func @transform_3(%arg0: i32, %arg1: i32) -> (i32, i32, i32) {
    %c0_i32 = arith.constant 0 : i32
    %c0_i32_0 = arith.constant 0 : i32
    return %arg0, %c0_i32, %arg1 : i32, i32, i32
  }
}

</mosaic_0001>

<llo_original>
// kernel: tpu_custom_call.1
$region0: #{tpu_custom_call.1}
  #allocation0 [shape = 'u32[]', space=smem, size = 0x4, offset = 0x4, fixed_abs, tag = 'smem constant byte address 0x4 - core index']
  #allocation1 [shape = 'u32[72,128]{1,0:T(1,128)}', space=vmem, size = 0x9000, scoped, tag = 'internal scratch']
  %s0 = inlined_call_operand.hbm [shape: f32[2,4,256], index: 0, kind: input, shape index: {}]
  %s1 = inlined_call_operand.vmem [shape: f32[4,4], index: 1, kind: input, shape index: {}]
  %s2 = inlined_call_operand.vmem [shape: f32[8,4], index: 2, kind: input, shape index: {}]
  %s3 = inlined_call_operand.hbm [shape: f32[2,8,256], index: 3, kind: output, shape index: {}]
  %s4 = sld [smem:[#allocation0]]
  $region49: #{tpu_custom_call.1} parent=0
    _
  %s6 = ssub.s32 1, %s4
  %s7 = scalar_select 0, %s6, %s4
  $region1: #{tpu_custom_call.1} parent=0
    #allocation2 [shape = 'u8[8192]{0}', space=vmem, size = 0x2000, scoped, tag = 'input window, operand 0']
    #allocation3 [shape = 's32[2]{0}', space=sflag, size = 0x8, scoped, tag = 'scoped memory for tpu_custom_call.1']
    #allocation4 [shape = 's32[2]{0}', space=sflag, size = 0x8, scoped, tag = 'scoped memory for tpu_custom_call.1']
    #allocation5 [shape = 'u8[16384]{0}', space=vmem, size = 0x4000, scoped, tag = 'output window, operand 0']
    %8 = vsyncpa [#allocation3], 0
    %s9 = scalar_lea.sflag [#allocation3], 1
    %10 = vsyncpa %s9, 0
    %11 = vsyncpa [#allocation4], 0
    %s12 = scalar_lea.sflag [#allocation4], 1
    %13 = vsyncpa %s12, 0
    loop: start=0, step=1, limit=4
    $region2: #{tpu_custom_call.1} parent=1 // loop_pre_header
      _
    $region3: #{tpu_custom_call.1} parent=1 // loop_header
      %s15 = sphi 0, %s19
      %p16 = scmp.ge.s32.totalorder %s15, 4
      %s22 = sphi 0, %s34
      %s23 = sphi 0, %s30
      %s24 = sphi 0, %s22
      %s25 = sphi 0, %s23
      %s26 = sphi 0, %s24
      %s27 = sphi 0, %s25
      %s39 = sphi 0, %s41
      %s42 = sphi 0, %s39
      %s43 = sphi 0, %s42
      %s59 = sphi 0, %s43
      %s63 = sphi 0, %s63
      %s65 = sphi 0, %s63
      %s66 = sphi 0, %s65
      %s80 = sphi 0, %s66
      %s84 = sphi 0, %s84
      %s86 = sphi 0, %s84
      %s87 = sphi 0, %s86
      %s101 = sphi 0, %s87
      %s109 = sphi 0, %s111
      %s112 = sphi 0, %s109
      %s113 = sphi 0, %s112
      %s129 = sphi 0, %s113
    $region4: #{tpu_custom_call.1} parent=1 // loop_header_branch
      %18 = sbr.rel (%p16) target = $region8
    $region5: #{tpu_custom_call.1} parent=1 // loop_body
      %s20 = ssub.s32 %s15, 1
      %s21 = ssub.s32 %s15, 2
      %s28 = sadd.s32 1, %s23
      %p29 = scmp.ge.s32.totalorder %s28, 1
      %s30 = scalar_select %p29, 0, %s28
      %s31 = sadd.s32 1, %s22
      %s32 = scalar_select %p29, %s31, %s22
      %p33 = scmp.ge.s32.totalorder %s32, 2
      %s34 = scalar_select %p33, 0, %s32
      %s35 = ssub.s32 %s22, %s34
      %s36 = ssub.s32 %s23, %s30
      %s37 = sor.u32 %s35, %s36
      %p38 = scmp.eq.s32.totalorder %s37, 0
      %s40 = sadd.s32 %s39, 1
      %s41 = scalar_select %p38, %s39, %s40
      %p44 = pneg %p38
      %p45 = scmp.eq.s32.totalorder %s15, 1
      %p46 = por %p44, %p45
      %p47 = scmp.ne.s32.totalorder %s39, %s42
      %p48 = scmp.eq.s32.totalorder %s15, 0
      %p49 = por %p47, %p48
      %p50 = scmp.ne.s32.totalorder %s39, %s42
      %p51 = scmp.eq.s32.totalorder %s20, 1
      %p52 = por %p50, %p51
      %p53 = scmp.ne.s32.totalorder %s42, %s43
      %p54 = scmp.eq.s32.totalorder %s20, 0
      %p55 = por %p53, %p54
      %p56 = scmp.ne.s32.totalorder %s42, %s43
      %p57 = scmp.eq.s32.totalorder %s21, 1
      %p58 = por %p56, %p57
      %p60 = scmp.ne.s32.totalorder %s43, %s59
      %p61 = scmp.eq.s32.totalorder %s21, 0
      %p62 = por %p60, %p61
      %s64 = sadd.s32 %s63, 1
      %p67 = scmp.eq.s32.totalorder %s15, 1
      %p68 = scmp.ne.s32.totalorder %s63, %s65
      %p69 = scmp.eq.s32.totalorder %s15, 0
      %p70 = por %p68, %p69
      %p71 = scmp.ne.s32.totalorder %s63, %s65
      %p72 = scmp.eq.s32.totalorder %s20, 1
      %p73 = por %p71, %p72
      %p74 = scmp.ne.s32.totalorder %s65, %s66
      %p75 = scmp.eq.s32.totalorder %s20, 0
      %p76 = por %p74, %p75
      %p77 = scmp.ne.s32.totalorder %s65, %s66
      %p78 = scmp.eq.s32.totalorder %s21, 1
      %p79 = por %p77, %p78
      %p81 = scmp.ne.s32.totalorder %s66, %s80
      %p82 = scmp.eq.s32.totalorder %s21, 0
      %p83 = por %p81, %p82
      %s85 = sadd.s32 %s84, 1
      %p88 = scmp.eq.s32.totalorder %s15, 1
      %p89 = scmp.ne.s32.totalorder %s84, %s86
      %p90 = scmp.eq.s32.totalorder %s15, 0
      %p91 = por %p89, %p90
      %p92 = scmp.ne.s32.totalorder %s84, %s86
      %p93 = scmp.eq.s32.totalorder %s20, 1
      %p94 = por %p92, %p93
      %p95 = scmp.ne.s32.totalorder %s86, %s87
      %p96 = scmp.eq.s32.totalorder %s20, 0
      %p97 = por %p95, %p96
      %p98 = scmp.ne.s32.totalorder %s86, %s87
      %p99 = scmp.eq.s32.totalorder %s21, 1
      %p100 = por %p98, %p99
      %p102 = scmp.ne.s32.totalorder %s87, %s101
      %p103 = scmp.eq.s32.totalorder %s21, 0
      %p104 = por %p102, %p103
      %s105 = ssub.s32 %s22, %s34
      %s106 = ssub.s32 %s23, %s30
      %s107 = sor.u32 %s105, %s106
      %p108 = scmp.eq.s32.totalorder %s107, 0
      %s110 = sadd.s32 %s109, 1
      %s111 = scalar_select %p108, %s109, %s110
      %p114 = pneg %p108
      %p115 = scmp.eq.s32.totalorder %s15, 1
      %p116 = por %p114, %p115
      %p117 = scmp.ne.s32.totalorder %s109, %s112
      %p118 = scmp.eq.s32.totalorder %s15, 0
      %p119 = por %p117, %p118
      %p120 = scmp.ne.s32.totalorder %s109, %s112
      %p121 = scmp.eq.s32.totalorder %s20, 1
      %p122 = por %p120, %p121
      %p123 = scmp.ne.s32.totalorder %s112, %s113
      %p124 = scmp.eq.s32.totalorder %s20, 0
      %p125 = por %p123, %p124
      %p126 = scmp.ne.s32.totalorder %s112, %s113
      %p127 = scmp.eq.s32.totalorder %s21, 1
      %p128 = por %p126, %p127
      %p130 = scmp.ne.s32.totalorder %s113, %s129
      %p131 = scmp.eq.s32.totalorder %s21, 0
      %p132 = por %p130, %p131
      %p133 = scmp.le.s32.totalorder 1, %s15
      %p134 = scmp.lt.s32.totalorder %s15, 3
      %p135 = pnand %p133, %p134
      %p136 = pneg %p135
      // Predicated region
      $region9: #{tpu_custom_call.1} parent=5 // pred_check
        _
      $region10: #{tpu_custom_call.1} parent=5 // pred_check_branch
        %138 = sbr.rel (%p135) target = $region12
      $region11: #{tpu_custom_call.1} parent=5 // pred_region
        %s139 = ssub.s32 %s15, 1
        // Predicated region
        $region13: #{tpu_custom_call.1} parent=11 // pred_check
          %p140 = pneg %p76
        $region14: #{tpu_custom_call.1} parent=11 // pred_check_branch
          %142 = sbr.rel (%p140) target = $region16
        $region15: #{tpu_custom_call.1} parent=11 // pred_region
          _
        $region16: #{tpu_custom_call.1} parent=11 // pred_fallthru
          _
        // Predicated region
        $region17: #{tpu_custom_call.1} parent=11 // pred_check
          %p143 = pneg %p97
        $region18: #{tpu_custom_call.1} parent=11 // pred_check_branch
          %145 = sbr.rel (%p143) target = $region20
        $region19: #{tpu_custom_call.1} parent=11 // pred_region
          _
        $region20: #{tpu_custom_call.1} parent=11 // pred_fallthru
          _
      $region12: #{tpu_custom_call.1} parent=5 // pred_fallthru
        _
      %p146 = scmp.lt.s32.totalorder %s15, 2
      // Predicated region
      $region21: #{tpu_custom_call.1} parent=5 // pred_check
        %p147 = pneg %p146
      $region22: #{tpu_custom_call.1} parent=5 // pred_check_branch
        %149 = sbr.rel (%p147) target = $region24
      $region23: #{tpu_custom_call.1} parent=5 // pred_region
        // Predicated region
        $region25: #{tpu_custom_call.1} parent=23 // pred_check
          %p150 = pneg %p49
        $region26: #{tpu_custom_call.1} parent=23 // pred_check_branch
          %152 = sbr.rel (%p150) target = $region28
        $region27: #{tpu_custom_call.1} parent=23 // pred_region
          %s153 = sand.u32 %s39, 1
          %s154 = scalar_lea.sflag [#allocation3], %s153
          %s155 = sand.u32 %s39, 1
          %s156 = smul.addr %s155, 8
          %s157 = scalar_lea.vmem [#allocation2], %s156
          %s158 = smul.u32 2, %s23
          %160 = vsyncadd %s154, 0
          %s161 = smul.addr %s22, 2
          %s162 = sadd.s32 %s158, %s161
          %s163 = smul.addr %s162, 4
          %s164 = scalar_lea.hbm %s0, %s163
          %s166 = sshll.u32 %s164, 4
          %s167 = int_to_ptr.hbm [resolvable:$true] %s166
          %s168 = sshll.u32 %s157, 4
          %s169 = int_to_ptr.vmem [resolvable:$true] %s168
          %171 = dma.hbm_to_vmem [thread:$0]  %s167, 128, %s169, %s154
        $region28: #{tpu_custom_call.1} parent=23 // pred_fallthru
          _
      $region24: #{tpu_custom_call.1} parent=5 // pred_fallthru
        _
      %p172 = scmp.le.s32.totalorder 1, %s15
      %p173 = scmp.lt.s32.totalorder %s15, 3
      %p174 = pnand %p172, %p173
      %p175 = pneg %p174
      // Predicated region
      $region29: #{tpu_custom_call.1} parent=5 // pred_check
        _
      $region30: #{tpu_custom_call.1} parent=5 // pred_check_branch
        %177 = sbr.rel (%p174) target = $region32
      $region31: #{tpu_custom_call.1} parent=5 // pred_region
        %s178 = ssub.s32 %s15, 1
        %s179 = sand.u32 %s42, 1
        %s180 = scalar_lea.sflag [#allocation3], %s179
        %s181 = sand.u32 %s42, 1
        %s182 = smul.addr %s181, 8
        %s183 = scalar_lea.vmem [#allocation2], %s182
        // Predicated region
        $region33: #{tpu_custom_call.1} parent=31 // pred_check
          %p184 = pneg %p55
        $region34: #{tpu_custom_call.1} parent=31 // pred_check_branch
          %186 = sbr.rel (%p184) target = $region36
        $region35: #{tpu_custom_call.1} parent=31 // pred_region
          %188 = dma.done %s180, 128
        $region36: #{tpu_custom_call.1} parent=31 // pred_fallthru
          _
        %s189 = sand.u32 %s42, 1
        %s190 = scalar_lea.sflag [#allocation3], %s189
        %s191 = sand.u32 %s42, 1
        %s192 = smul.addr %s191, 8
        %s193 = scalar_lea.vmem [#allocation2], %s192
        %p194 = pneg %p55
        %p195 = pneg %p52
        %p196 = pneg %p76
        %p197 = pneg %p73
        %p198 = pneg %p97
        %p199 = pneg %p94
        %p200 = pneg %p125
        %p201 = pneg %p122
        %s202 = sand.u32 %s112, 1
        %s203 = scalar_lea.sflag [#allocation4], %s202
        %s204 = sand.u32 %s112, 1
        %s205 = smul.addr %s204, 16
        %s206 = scalar_lea.vmem [#allocation5], %s205
        %s207 = smul.u32 2, %s25
        %s208 = smul.u32 2, %s25
        %v209 = vld [vmem:[%s1] sm:$0xf]
        %v210 = vld [vmem:[%s2] sm:$0xff]
        %v211 = vld [vmem:[%s183] sm:$0xff]
        %213 = vst [vmem:[#allocation1] ss:$2 sm:$0xff] %v211
        %v214 = vld.sshfl [vmem:[#allocation1] sm:$0xff pattern:$0x75316420]
        %v215 = vld.sshfl [vmem:[#allocation1 + $0x8] sm:$0xff pattern:$0x75316420]
        %vm216 = vcmask 31744
        %v218 = vsel %vm216, %v209, 0
        %vm220 = vcmask 1043456
        %v221 = vsel %vm220, %v214, 0
        %v223 = vsel %vm220, %v215, 0
        %225 = vmatpush.msra.mxu0 0.0
        %226 = vmatpush.msra.mxu0 0.0
        %227 = vmatpush.msra.mxu0 0.0
        %228 = vmatpush.msra.mxu0 0.0
        %229 = vmatpush.msra.mxu0 0.0
        %230 = vmatpush.msra.mxu0 0.0
        %231 = vmatpush.msra.mxu0 0.0
        %232 = vmatpush.msra.mxu0 0.0
        %233 = vmatpush.msra.mxu0 0.0
        %234 = vmatpush.msra.mxu0 0.0
        %235 = vmatpush.msra.mxu0 0.0
        %236 = vmatpush.msra.mxu0 0.0
        %237 = vmatpush.msra.mxu0 0.0
        %238 = vmatpush.msra.mxu0 0.0
        %239 = vmatpush.msra.mxu0 0.0
        %240 = vmatpush.msra.mxu0 %v221
        %241 = vmatmul.f32.gmra.mxu0 %v218
        %v242 = vpop.f32.mrf.mxu0
        %v243 = vadd.f32 0.0, %v242
        %244 = vdwg.mxu0
        %245 = vmatpush.msra.mxu0 0.0
        %246 = vmatpush.msra.mxu0 0.0
        %247 = vmatpush.msra.mxu0 0.0
        %248 = vmatpush.msra.mxu0 0.0
        %249 = vmatpush.msra.mxu0 0.0
        %250 = vmatpush.msra.mxu0 0.0
        %251 = vmatpush.msra.mxu0 0.0
        %252 = vmatpush.msra.mxu0 0.0
        %253 = vmatpush.msra.mxu0 0.0
        %254 = vmatpush.msra.mxu0 0.0
        %255 = vmatpush.msra.mxu0 0.0
        %256 = vmatpush.msra.mxu0 0.0
        %257 = vmatpush.msra.mxu0 0.0
        %258 = vmatpush.msra.mxu0 0.0
        %259 = vmatpush.msra.mxu0 0.0
        %260 = vmatpush.msra.mxu0 %v223
        %261 = vmatmul.f32.gmra.mxu0 %v218
        %v262 = vpop.f32.mrf.mxu0
        %v263 = vadd.f32 0.0, %v262
        %264 = vdwg.mxu0
        %265 = vst [vmem:[#allocation1] ss:$2 sm:$0xff] %v211
        %v266 = vld.sshfl [vmem:[#allocation1] sm:$0xff pattern:$0x75316420]
        %v267 = vld.sshfl [vmem:[#allocation1 + $0x8] sm:$0xff pattern:$0x75316420]
        %v270 = vmul.f32 %v243, %v266
        %v271 = vmul.f32 %v263, %v267
        %v273 = vsel %vm216, %v210, 0
        %v276 = vsel %vm220, %v270, 0
        %v279 = vsel %vm220, %v271, 0
        %281 = vmatpush.msra.mxu0 0.0
        %282 = vmatpush.msra.mxu0 0.0
        %283 = vmatpush.msra.mxu0 0.0
        %284 = vmatpush.msra.mxu0 0.0
        %285 = vmatpush.msra.mxu0 0.0
        %286 = vmatpush.msra.mxu0 0.0
        %287 = vmatpush.msra.mxu0 0.0
        %288 = vmatpush.msra.mxu0 0.0
        %289 = vmatpush.msra.mxu0 0.0
        %290 = vmatpush.msra.mxu0 0.0
        %291 = vmatpush.msra.mxu0 0.0
        %292 = vmatpush.msra.mxu0 0.0
        %293 = vmatpush.msra.mxu0 0.0
        %294 = vmatpush.msra.mxu0 0.0
        %295 = vmatpush.msra.mxu0 0.0
        %296 = vmatpush.msra.mxu0 %v276
        %297 = vmatmul.f32.gmra.mxu0 %v273
        %v298 = vpop.f32.mrf.mxu0
        %v299 = vadd.f32 0.0, %v298
        %300 = vdwg.mxu0
        %301 = vmatpush.msra.mxu0 0.0
        %302 = vmatpush.msra.mxu0 0.0
        %303 = vmatpush.msra.mxu0 0.0
        %304 = vmatpush.msra.mxu0 0.0
        %305 = vmatpush.msra.mxu0 0.0
        %306 = vmatpush.msra.mxu0 0.0
        %307 = vmatpush.msra.mxu0 0.0
        %308 = vmatpush.msra.mxu0 0.0
        %309 = vmatpush.msra.mxu0 0.0
        %310 = vmatpush.msra.mxu0 0.0
        %311 = vmatpush.msra.mxu0 0.0
        %312 = vmatpush.msra.mxu0 0.0
        %313 = vmatpush.msra.mxu0 0.0
        %314 = vmatpush.msra.mxu0 0.0
        %315 = vmatpush.msra.mxu0 0.0
        %316 = vmatpush.msra.mxu0 %v279
        %317 = vmatmul.f32.gmra.mxu0 %v273
        %v318 = vpop.f32.mrf.mxu0
        %v319 = vadd.f32 0.0, %v318
        %320 = vdwg.mxu0
        %321 = vst [vmem:[%s206] sm:$0xff] %v299
        %322 = vst [vmem:[%s206 + $0x8] sm:$0xff] %v319
        %s323 = sand.u32 %s112, 1
        %s324 = scalar_lea.sflag [#allocation4], %s323
        %s325 = sand.u32 %s112, 1
        %s326 = smul.addr %s325, 16
        %s327 = scalar_lea.vmem [#allocation5], %s326
        // Predicated region
        $region37: #{tpu_custom_call.1} parent=31 // pred_check
          %p328 = pneg %p122
        $region38: #{tpu_custom_call.1} parent=31 // pred_check_branch
          %330 = sbr.rel (%p328) target = $region40
        $region39: #{tpu_custom_call.1} parent=31 // pred_region
          %s331 = smul.u32 2, %s25
          %333 = vsyncadd %s324, 0
          %s334 = smul.addr %s24, 2
          %s335 = sadd.s32 %s331, %s334
          %s336 = smul.addr %s335, 8
          %s337 = scalar_lea.hbm %s3, %s336
          %s339 = sshll.u32 %s327, 4
          %s340 = int_to_ptr.vmem [resolvable:$true] %s339
          %s341 = sshll.u32 %s337, 4
          %s342 = int_to_ptr.hbm [resolvable:$true] %s341
          %344 = dma.vmem_to_hbm [thread:$0]  %s340, 256, %s342, %s324
        $region40: #{tpu_custom_call.1} parent=31 // pred_fallthru
          _
      $region32: #{tpu_custom_call.1} parent=5 // pred_fallthru
        _
      %p345 = scmp.le.s32.totalorder 2, %s15
      // Predicated region
      $region41: #{tpu_custom_call.1} parent=5 // pred_check
        %p346 = pneg %p345
      $region42: #{tpu_custom_call.1} parent=5 // pred_check_branch
        %348 = sbr.rel (%p346) target = $region44
      $region43: #{tpu_custom_call.1} parent=5 // pred_region
        %s349 = ssub.s32 %s15, 2
        // Predicated region
        $region45: #{tpu_custom_call.1} parent=43 // pred_check
          %p350 = pneg %p128
        $region46: #{tpu_custom_call.1} parent=43 // pred_check_branch
          %352 = sbr.rel (%p350) target = $region48
        $region47: #{tpu_custom_call.1} parent=43 // pred_region
          %s353 = sand.u32 %s113, 1
          %s354 = scalar_lea.sflag [#allocation4], %s353
          %s355 = sand.u32 %s113, 1
          %s356 = smul.addr %s355, 16
          %s357 = scalar_lea.vmem [#allocation5], %s356
          %359 = dma.done %s354, 256
        $region48: #{tpu_custom_call.1} parent=43 // pred_fallthru
          _
      $region44: #{tpu_custom_call.1} parent=5 // pred_fallthru
        _
    $region6: #{tpu_custom_call.1} parent=1 // loop_footer
      %s19 = sadd.s32 1, %s15
    $region7: #{tpu_custom_call.1} parent=1 // loop_footer_branch
      %14 = sbr.rel target = $region3
    $region8: #{tpu_custom_call.1} parent=1 // loop_exit
      _
    %360 = vsyncpa [#allocation3], 1
    %s361 = scalar_lea.sflag [#allocation3], 1
    %362 = vsyncpa %s361, 1
    %363 = vsyncpa [#allocation4], 1
    %s364 = scalar_lea.sflag [#allocation4], 1
    %365 = vsyncpa %s364, 1

</llo_original>
